<compile_context>
chip_gen: v6e
topology: v6e:2x2x1
jax: 0.10.0
libtpu: 0.0.40
codegen_flags: <defaults>
</compile_context>

<pallas_src>
import jax
import jax.numpy as jnp
from jax.experimental import pallas as pl
from jax.experimental.pallas import tpu as pltpu

NUM_ITEM_FEATURES = 35
NUM_OUTPUTS = 64
H1, H2 = 256, 128


def itemnn_kernel(x_ref, w1_ref, b1_ref, w2_ref, b2_ref, w3_ref, b3_ref, o_ref):
    """Fused 3-layer MLP on one batch tile (all weights resident in VMEM).

    x_ref / w*_ref are bf16; biases and output are f32; all matmuls accumulate
    in f32 on the MXU.
    """
    x = x_ref[...]  # bf16 (tile_b, 35)

    # fc1 + relu  (bf16 x bf16 -> f32 acc)
    h = jnp.dot(x, w1_ref[...], preferred_element_type=jnp.float32) + b1_ref[...]
    h = jnp.maximum(h, 0.0).astype(jnp.bfloat16)

    # fc2 + relu
    h = jnp.dot(h, w2_ref[...], preferred_element_type=jnp.float32) + b2_ref[...]
    h = jnp.maximum(h, 0.0).astype(jnp.bfloat16)

    # fc3 (no activation)
    o = jnp.dot(h, w3_ref[...], preferred_element_type=jnp.float32) + b3_ref[...]
    o_ref[...] = o.astype(o_ref.dtype)


def itemnn_forward(x, params, *, tile_b=1024):
    """x: (B, num_item_features). params: dict of bf16 transposed weights, f32 biases."""
    B, F = x.shape
    assert F == NUM_ITEM_FEATURES

    # Clamp the tile to the (8-rounded) batch so tiny batches don't over-pad,
    # then pad the batch up to a multiple of the tile (no divisibility assert).
    tb = max(8, min(tile_b, pl.cdiv(B, 8) * 8))
    padded_B = pl.cdiv(B, tb) * tb

    x_bf16 = x.astype(jnp.bfloat16)
    if padded_B != B:
        x_bf16 = jnp.pad(x_bf16, ((0, padded_B - B), (0, 0)))

    w1, b1 = params["w1"], params["b1"]   # (35, 256) bf16, (1, 256) f32
    w2, b2 = params["w2"], params["b2"]   # (256, 128) bf16, (1, 128) f32
    w3, b3 = params["w3"], params["b3"]   # (128, 64)  bf16, (1, 64)  f32

    grid = (padded_B // tb,)

    def row_map(i):
        return (i, 0)

    def fixed_map(i):
        return (0, 0)

    out = pl.pallas_call(
        itemnn_kernel,
        out_shape=jax.ShapeDtypeStruct((padded_B, NUM_OUTPUTS), jnp.float32),
        grid_spec=pltpu.PrefetchScalarGridSpec(
            num_scalar_prefetch=0,
            grid=grid,
            in_specs=[
                pl.BlockSpec((tb, F), row_map),              # x tile (bf16)
                pl.BlockSpec((F, H1), fixed_map),            # w1
                pl.BlockSpec((1, H1), fixed_map),            # b1
                pl.BlockSpec((H1, H2), fixed_map),           # w2
                pl.BlockSpec((1, H2), fixed_map),            # b2
                pl.BlockSpec((H2, NUM_OUTPUTS), fixed_map),  # w3
                pl.BlockSpec((1, NUM_OUTPUTS), fixed_map),   # b3
            ],
            out_specs=pl.BlockSpec((tb, NUM_OUTPUTS), row_map),
        ),
        compiler_params=pltpu.CompilerParams(
            dimension_semantics=("parallel",),
        ),
    )(x_bf16, w1, b1, w2, b2, w3, b3)

    return out[:B] if padded_B != B else out


def init_params(key):
    """Deterministic init mimicking nn.Linear (uniform +- 1/sqrt(fan_in)).

    Weights stored already transposed to (in, out) in bf16; biases f32 (1, out).
    """
    def linear(key, fan_in, fan_out):
        kw, kb = jax.random.split(key)
        bound = 1.0 / jnp.sqrt(jnp.float32(fan_in))
        w = jax.random.uniform(kw, (fan_in, fan_out), jnp.float32, -bound, bound)
        b = jax.random.uniform(kb, (1, fan_out), jnp.float32, -bound, bound)
        return w.astype(jnp.bfloat16), b

    k1, k2, k3 = jax.random.split(key, 3)
    w1, b1 = linear(k1, NUM_ITEM_FEATURES, H1)
    w2, b2 = linear(k2, H1, H2)
    w3, b3 = linear(k3, H2, NUM_OUTPUTS)
    return {"w1": w1, "b1": b1, "w2": w2, "b2": b2, "w3": w3, "b3": b3}


def reference_forward(x, p):
    """Pure-JAX f32 reference using the same (bf16-stored) parameters."""
    xf = x.astype(jnp.bfloat16).astype(jnp.float32)
    w1 = p["w1"].astype(jnp.float32)
    w2 = p["w2"].astype(jnp.float32)
    w3 = p["w3"].astype(jnp.float32)
    h = jnp.maximum(xf @ w1 + p["b1"], 0.0)
    h = jnp.maximum(h @ w2 + p["b2"], 0.0)
    return h @ w3 + p["b3"]


if __name__ == "__main__":
    key = jax.random.PRNGKey(0)
    kx, kp = jax.random.split(key)

    # Small, non-multiple-of-8 batch to exercise the padding path.
    B = 12
    x = jax.random.normal(kx, (B, NUM_ITEM_FEATURES), jnp.float32)
    params = init_params(kp)

    out = itemnn_forward(x, params)
    out = jax.block_until_ready(out)

    ref = reference_forward(x, params)
    assert out.shape == (B, NUM_OUTPUTS)
    # bf16 operands / intermediates => ~1e-2-level error vs f32 reference.
    assert jnp.allclose(out, ref, atol=5e-2, rtol=5e-2), (
        float(jnp.max(jnp.abs(out - ref))))

    print("KERNEL_OK")
</pallas_src>

<mosaic_0001>
module attributes {stable_mosaic.version = 11 : i64} {
  func.func @itemnn_kernel(%arg0: i32, %arg1: memref<16x35xbf16, #tpu.memory_space<vmem>>, %arg2: memref<35x256xbf16, #tpu.memory_space<vmem>>, %arg3: memref<1x256xf32, #tpu.memory_space<vmem>>, %arg4: memref<256x128xbf16, #tpu.memory_space<vmem>>, %arg5: memref<1x128xf32, #tpu.memory_space<vmem>>, %arg6: memref<128x64xbf16, #tpu.memory_space<vmem>>, %arg7: memref<1x64xf32, #tpu.memory_space<vmem>>, %arg8: memref<16x64xf32, #tpu.memory_space<vmem>>) attributes {dimension_semantics = [#tpu.dimension_semantics<parallel>], iteration_bounds = array<i64: 1>, scalar_prefetch = 0 : i64, scratch_operands = 0 : i64, tpu.core_type = #tpu.core_type<tc>, window_params = [{transform_indices = @transform_0, window_bounds = array<i64: 16, 35>}, {pipeline_mode = #tpu.pipeline_mode<synchronous>, transform_indices = @transform_1, window_bounds = array<i64: 35, 256>}, {pipeline_mode = #tpu.pipeline_mode<synchronous>, transform_indices = @transform_2, window_bounds = array<i64: 1, 256>}, {pipeline_mode = #tpu.pipeline_mode<synchronous>, transform_indices = @transform_3, window_bounds = array<i64: 256, 128>}, {pipeline_mode = #tpu.pipeline_mode<synchronous>, transform_indices = @transform_4, window_bounds = array<i64: 1, 128>}, {pipeline_mode = #tpu.pipeline_mode<synchronous>, transform_indices = @transform_5, window_bounds = array<i64: 128, 64>}, {pipeline_mode = #tpu.pipeline_mode<synchronous>, transform_indices = @transform_6, window_bounds = array<i64: 1, 64>}, {transform_indices = @transform_7, window_bounds = array<i64: 16, 64>}]} {
    %c0 = arith.constant 0 : index
    %c0_0 = arith.constant 0 : index
    %0 = vector.load %arg1[%c0, %c0_0] : memref<16x35xbf16, #tpu.memory_space<vmem>>, vector<16x35xbf16>
    %c0_1 = arith.constant 0 : index
    %c0_2 = arith.constant 0 : index
    %1 = vector.load %arg2[%c0_1, %c0_2] : memref<35x256xbf16, #tpu.memory_space<vmem>>, vector<35x256xbf16>
    %cst = arith.constant dense<0.000000e+00> : vector<16x256xf32>
    %2 = tpu.matmul %0, %1, %cst {dimension_numbers = #tpu.dot_dimension_numbers<[1], [0], [0], [1], [0, 0, 1, 1], [], []>} : vector<16x35xbf16>, vector<35x256xbf16>, vector<16x256xf32> -> vector<16x256xf32>
    %c0_3 = arith.constant 0 : index
    %c0_4 = arith.constant 0 : index
    %3 = vector.load %arg3[%c0_3, %c0_4] : memref<1x256xf32, #tpu.memory_space<vmem>>, vector<1x256xf32>
    %4 = vector.broadcast %3 : vector<1x256xf32> to vector<16x256xf32>
    %5 = arith.addf %2, %4 : vector<16x256xf32>
    %cst_5 = arith.constant 0.000000e+00 : f32
    %6 = vector.broadcast %cst_5 : f32 to vector<16x256xf32>
    %7 = arith.maximumf %5, %6 : vector<16x256xf32>
    %8 = arith.truncf %7 : vector<16x256xf32> to vector<16x256xbf16>
    %c0_6 = arith.constant 0 : index
    %c0_7 = arith.constant 0 : index
    %9 = vector.load %arg4[%c0_6, %c0_7] : memref<256x128xbf16, #tpu.memory_space<vmem>>, vector<256x128xbf16>
    %cst_8 = arith.constant dense<0.000000e+00> : vector<16x128xf32>
    %10 = tpu.matmul %8, %9, %cst_8 {dimension_numbers = #tpu.dot_dimension_numbers<[1], [0], [0], [1], [0, 0, 1, 1], [], []>} : vector<16x256xbf16>, vector<256x128xbf16>, vector<16x128xf32> -> vector<16x128xf32>
    %c0_9 = arith.constant 0 : index
    %c0_10 = arith.constant 0 : index
    %11 = vector.load %arg5[%c0_9, %c0_10] : memref<1x128xf32, #tpu.memory_space<vmem>>, vector<1x128xf32>
    %12 = vector.broadcast %11 : vector<1x128xf32> to vector<16x128xf32>
    %13 = arith.addf %10, %12 : vector<16x128xf32>
    %cst_11 = arith.constant 0.000000e+00 : f32
    %14 = vector.broadcast %cst_11 : f32 to vector<16x128xf32>
    %15 = arith.maximumf %13, %14 : vector<16x128xf32>
    %16 = arith.truncf %15 : vector<16x128xf32> to vector<16x128xbf16>
    %c0_12 = arith.constant 0 : index
    %c0_13 = arith.constant 0 : index
    %17 = vector.load %arg6[%c0_12, %c0_13] : memref<128x64xbf16, #tpu.memory_space<vmem>>, vector<128x64xbf16>
    %cst_14 = arith.constant dense<0.000000e+00> : vector<16x64xf32>
    %18 = tpu.matmul %16, %17, %cst_14 {dimension_numbers = #tpu.dot_dimension_numbers<[1], [0], [0], [1], [0, 0, 1, 1], [], []>} : vector<16x128xbf16>, vector<128x64xbf16>, vector<16x64xf32> -> vector<16x64xf32>
    %c0_15 = arith.constant 0 : index
    %c0_16 = arith.constant 0 : index
    %19 = vector.load %arg7[%c0_15, %c0_16] : memref<1x64xf32, #tpu.memory_space<vmem>>, vector<1x64xf32>
    %20 = vector.broadcast %19 : vector<1x64xf32> to vector<16x64xf32>
    %21 = arith.addf %18, %20 : vector<16x64xf32>
    %c0_17 = arith.constant 0 : index
    %c0_18 = arith.constant 0 : index
    %22 = vector.load %arg8[%c0_17, %c0_18] : memref<16x64xf32, #tpu.memory_space<vmem>>, vector<16x64xf32>
    tpu.vector_store %arg8[%c0_17, %c0_18], %21 {strides = array<i32>} : memref<16x64xf32, #tpu.memory_space<vmem>>, vector<16x64xf32>,
    return
  }
  func.func @transform_0(%arg0: i32) -> (i32, i32) {
    %c0_i32 = arith.constant 0 : i32
    %c0_i32_0 = arith.constant 0 : i32
    return %arg0, %c0_i32 : i32, i32
  }
  func.func @transform_1(%arg0: i32) -> (i32, i32) {
    %c0_i32 = arith.constant 0 : i32
    %c0_i32_0 = arith.constant 0 : i32
    %c0_i32_1 = arith.constant 0 : i32
    return %c0_i32, %c0_i32_0 : i32, i32
  }
  func.func @transform_2(%arg0: i32) -> (i32, i32) {
    %c0_i32 = arith.constant 0 : i32
    %c0_i32_0 = arith.constant 0 : i32
    %c0_i32_1 = arith.constant 0 : i32
    return %c0_i32, %c0_i32_0 : i32, i32
  }
  func.func @transform_3(%arg0: i32) -> (i32, i32) {
    %c0_i32 = arith.constant 0 : i32
    %c0_i32_0 = arith.constant 0 : i32
    %c0_i32_1 = arith.constant 0 : i32
    return %c0_i32, %c0_i32_0 : i32, i32
  }
  func.func @transform_4(%arg0: i32) -> (i32, i32) {
    %c0_i32 = arith.constant 0 : i32
    %c0_i32_0 = arith.constant 0 : i32
    %c0_i32_1 = arith.constant 0 : i32
    return %c0_i32, %c0_i32_0 : i32, i32
  }
  func.func @transform_5(%arg0: i32) -> (i32, i32) {
    %c0_i32 = arith.constant 0 : i32
    %c0_i32_0 = arith.constant 0 : i32
    %c0_i32_1 = arith.constant 0 : i32
    return %c0_i32, %c0_i32_0 : i32, i32
  }
  func.func @transform_6(%arg0: i32) -> (i32, i32) {
    %c0_i32 = arith.constant 0 : i32
    %c0_i32_0 = arith.constant 0 : i32
    %c0_i32_1 = arith.constant 0 : i32
    return %c0_i32, %c0_i32_0 : i32, i32
  }
  func.func @transform_7(%arg0: i32) -> (i32, i32) {
    %c0_i32 = arith.constant 0 : i32
    %c0_i32_0 = arith.constant 0 : i32
    return %arg0, %c0_i32 : i32, i32
  }
}

</mosaic_0001>

<llo_original>
// kernel: tpu_custom_call.1
$region0: #{tpu_custom_call.1}
  #allocation0 [shape = 'u32[]', space=smem, size = 0x4, offset = 0x4, fixed_abs, tag = 'smem constant byte address 0x4 - core index']
  #allocation1 [shape = 'u32[144,128]{1,0:T(1,128)}', space=vmem, size = 0x12000, scoped, tag = 'internal scratch']
  %s0 = inlined_call_operand.vmem [shape: bf16[16,35], index: 0, kind: input, shape index: {}]
  %s1 = inlined_call_operand.vmem [shape: bf16[35,256], index: 1, kind: input, shape index: {}]
  %s2 = inlined_call_operand.vmem [shape: f32[1,256], index: 2, kind: input, shape index: {}]
  %s3 = inlined_call_operand.hbm [shape: bf16[256,128], index: 3, kind: input, shape index: {}]
  %s4 = inlined_call_operand.vmem [shape: f32[1,128], index: 4, kind: input, shape index: {}]
  %s5 = inlined_call_operand.vmem [shape: bf16[128,64], index: 5, kind: input, shape index: {}]
  %s6 = inlined_call_operand.vmem [shape: f32[1,64], index: 6, kind: input, shape index: {}]
  %s7 = inlined_call_operand.hbm [shape: f32[16,64], index: 7, kind: output, shape index: {}]
  %s8 = sld [smem:[#allocation0]]
  $region42: #{tpu_custom_call.1} parent=0
    _
  %s10 = ssub.s32 1, %s8
  %s11 = scalar_select 0, %s10, %s8
  $region1: #{tpu_custom_call.1} parent=0
    #allocation2 [shape = 'u8[65536]{0}', space=vmem, size = 0x10000, scoped, tag = 'input window, operand 3, single buffered']
    #allocation3 [shape = 's32[1]{0}', space=sflag, size = 0x4, scoped, tag = 'scoped memory for tpu_custom_call.1']
    #allocation4 [shape = 's32[1]{0}', space=sflag, size = 0x4, scoped, tag = 'scoped memory for tpu_custom_call.1']
    #allocation5 [shape = 'u8[8192]{0}', space=vmem, size = 0x2000, scoped, tag = 'output window, operand 0, single buffered']
    %12 = vsyncpa [#allocation3], 0
    %13 = vsyncpa [#allocation4], 0
    // Predicated region
    $region2: #{tpu_custom_call.1} parent=1 // pred_check
      _
    $region3: #{tpu_custom_call.1} parent=1 // pred_check_branch
      %15 = sbr.rel (0) target = $region5
    $region4: #{tpu_custom_call.1} parent=1 // pred_region
      _
    $region5: #{tpu_custom_call.1} parent=1 // pred_fallthru
      _
    // Predicated region
    $region6: #{tpu_custom_call.1} parent=1 // pred_check
      _
    $region7: #{tpu_custom_call.1} parent=1 // pred_check_branch
      %17 = sbr.rel (0) target = $region9
    $region8: #{tpu_custom_call.1} parent=1 // pred_region
      _
    $region9: #{tpu_custom_call.1} parent=1 // pred_fallthru
      _
    // Predicated region
    $region10: #{tpu_custom_call.1} parent=1 // pred_check
      _
    $region11: #{tpu_custom_call.1} parent=1 // pred_check_branch
      %19 = sbr.rel (0) target = $region13
    $region12: #{tpu_custom_call.1} parent=1 // pred_region
      _
    $region13: #{tpu_custom_call.1} parent=1 // pred_fallthru
      _
    // Predicated region
    $region14: #{tpu_custom_call.1} parent=1 // pred_check
      _
    $region15: #{tpu_custom_call.1} parent=1 // pred_check_branch
      %21 = sbr.rel (0) target = $region17
    $region16: #{tpu_custom_call.1} parent=1 // pred_region
      %s23 = ssub.s32 2048, 2048
      %24 = vsyncadd [#allocation3], %s23
      %s25 = sshll.u32 [#allocation2], 4
      %s26 = int_to_ptr.vmem [resolvable:$true] %s25
      %31 = dma.hbm_to_vmem [thread:$0]  %s3, 2048, %s26, [#allocation3], 64, 64, 4
    $region17: #{tpu_custom_call.1} parent=1 // pred_fallthru
      _
    // Predicated region
    $region18: #{tpu_custom_call.1} parent=1 // pred_check
      _
    $region19: #{tpu_custom_call.1} parent=1 // pred_check_branch
      %33 = sbr.rel (0) target = $region21
    $region20: #{tpu_custom_call.1} parent=1 // pred_region
      _
    $region21: #{tpu_custom_call.1} parent=1 // pred_fallthru
      _
    // Predicated region
    $region22: #{tpu_custom_call.1} parent=1 // pred_check
      _
    $region23: #{tpu_custom_call.1} parent=1 // pred_check_branch
      %35 = sbr.rel (0) target = $region25
    $region24: #{tpu_custom_call.1} parent=1 // pred_region
      _
    $region25: #{tpu_custom_call.1} parent=1 // pred_fallthru
      _
    // Predicated region
    $region26: #{tpu_custom_call.1} parent=1 // pred_check
      _
    $region27: #{tpu_custom_call.1} parent=1 // pred_check_branch
      %37 = sbr.rel (0) target = $region29
    $region28: #{tpu_custom_call.1} parent=1 // pred_region
      _
    $region29: #{tpu_custom_call.1} parent=1 // pred_fallthru
      _
    // Predicated region
    $region30: #{tpu_custom_call.1} parent=1 // pred_check
      _
    $region31: #{tpu_custom_call.1} parent=1 // pred_check_branch
      %39 = sbr.rel (0) target = $region33
    $region32: #{tpu_custom_call.1} parent=1 // pred_region
      %40 = dma.done [#allocation3], 2048
    $region33: #{tpu_custom_call.1} parent=1 // pred_fallthru
      _
    %v42 = vld [vmem:[%s0] sm:$0xf]
    %v43 = vld [vmem:[%s0 + $0x4] sm:$0xf]
    %v44 = vld [vmem:[%s1] sm:$0xff]
    %v45 = vld [vmem:[%s1 + $0x8] sm:$0xff]
    %v46 = vld [vmem:[%s1 + $0x10] sm:$0xff]
    %v47 = vld [vmem:[%s1 + $0x18] sm:$0xff]
    %v48 = vld [vmem:[%s1 + $0x20] sm:$0x33]
    %v49 = vld [vmem:[%s2] sm:$0x3]
    %v51 = vlaneseq
    %v52 = vshrl.u32 %v51, 7
    %v53 = vsub.s32 0, %v52
    %v54 = vrot.slane %v49, %v53
    %v55 = vlaneseq
    %v56 = vshrl.u32 %v55, 7
    %v57 = vsub.s32 1, %v56
    %v58 = vrot.slane %v49, %v57
    %v63 = vunpack.c.l.b16 %v42
    %v64 = vunpack.c.l.b16 %v43
    %v65 = vpack.c.b16 %v64, %v63
    %v71 = vunpack.c.l.b16 %v44
    %v72 = vunpack.c.h.b16 %v44
    %v73 = vunpack.c.l.b16 %v45
    %v74 = vunpack.c.h.b16 %v45
    %v75 = vunpack.c.l.b16 %v46
    %v76 = vunpack.c.h.b16 %v46
    %v77 = vunpack.c.l.b16 %v47
    %v78 = vunpack.c.h.b16 %v47
    %v79 = vunpack.c.l.b16 %v48
    %v80 = vunpack.c.h.b16 %v48
    %v81 = vpack.c.b16 %v73, %v71
    %v82 = vpack.c.b16 %v74, %v72
    %v83 = vpack.c.b16 %v77, %v75
    %v84 = vpack.c.b16 %v78, %v76
    %v85 = vpack.c.b16 %v79, %v79
    %v86 = vpack.c.b16 %v80, %v80
    %vm91 = vcmask 285696
    %v93 = vsel %vm91, %v65, 0
    %vm95 = vcmask 1040384
    %vm96 = vcmask 1041408
    %v97 = vsel %vm95, 4294967295, 65535
    %v98 = vsel %vm96, %v97, 0
    %v100 = vand.u32 %v85, %v98
    %v103 = vand.u32 %v86, %v98
    %105 = vmatprep.subr.bf16.mxu0 0
    %106 = vmatpush1.bf16.msra.mxu0 0
    %107 = vmatprep.subr.bf16.mxu0 0
    %108 = vmatpush1.bf16.msra.mxu0 0
    %109 = vmatprep.subr.bf16.mxu0 0
    %110 = vmatpush1.bf16.msra.mxu0 0
    %111 = vmatprep.subr.bf16.mxu0 0
    %112 = vmatpush1.bf16.msra.mxu0 0
    %113 = vmatprep.subr.bf16.mxu0 0
    %114 = vmatpush1.bf16.msra.mxu0 0
    %115 = vmatprep.subr.bf16.mxu0 %v103
    %116 = vmatpush1.bf16.msra.mxu0 %v100
    %117 = vmatprep.subr.bf16.mxu0 %v84
    %118 = vmatpush1.bf16.msra.mxu0 %v83
    %119 = vmatprep.subr.bf16.mxu0 %v82
    %120 = vmatpush1.bf16.msra.mxu0 %v81
    %121 = vmatprep.subr.bf16.mxu0 0
    %122 = vmatpush2.bf16.msra.mxu0 0
    %123 = vmatprep.subr.bf16.mxu0 0
    %124 = vmatpush2.bf16.msra.mxu0 0
    %125 = vmatprep.subr.bf16.mxu0 0
    %126 = vmatpush2.bf16.msra.mxu0 0
    %127 = vmatprep.subr.bf16.mxu0 0
    %128 = vmatpush2.bf16.msra.mxu0 0
    %129 = vmatprep.subr.bf16.mxu0 0
    %130 = vmatpush2.bf16.msra.mxu0 0
    %131 = vmatprep.subr.bf16.mxu0 0
    %132 = vmatpush2.bf16.msra.mxu0 0
    %133 = vmatprep.subr.bf16.mxu0 0
    %134 = vmatpush2.bf16.msra.mxu0 0
    %135 = vmatprep.subr.bf16.mxu0 0
    %136 = vmatpush2.bf16.msra.mxu0 0
    %137 = vmatprep.mubr.bf16.mxu0 0
    %138 = vmatmul.mubr.bf16.gmra.mxu0 %v93
    %v139 = vpop.f32.mrf.mxu0
    %v140 = vadd.f32 %v54, %v139
    %v141 = vpop.f32.mrf.mxu0
    %v142 = vadd.f32 %v58, %v141
    %v143 = vpop.f32.mrf.mxu0
    %v144 = vadd.f32 %v54, %v143
    %v145 = vpop.f32.mrf.mxu0
    %v146 = vadd.f32 %v58, %v145
    %147 = vdwg.mxu0
    %v148 = vmax.f32 %v140, 0.0
    %v149 = vmax.f32 %v142, 0.0
    %v150 = vmax.f32 %v144, 0.0
    %v151 = vmax.f32 %v146, 0.0
    %v152 = vpack.c.bf16 %v150, %v148
    %v153 = vpack.c.bf16 %v151, %v149
    %v154 = vld [vmem:[#allocation2] sm:$0xf]
    %v155 = vld [vmem:[#allocation2 + $0x4] sm:$0xf]
    %v156 = vld [vmem:[#allocation2 + $0x8] sm:$0xf]
    %v157 = vld [vmem:[#allocation2 + $0xc] sm:$0xf]
    %v158 = vld [vmem:[#allocation2 + $0x10] sm:$0xf]
    %v159 = vld [vmem:[#allocation2 + $0x14] sm:$0xf]
    %v160 = vld [vmem:[#allocation2 + $0x18] sm:$0xf]
    %v161 = vld [vmem:[#allocation2 + $0x1c] sm:$0xf]
    %v162 = vld [vmem:[#allocation2 + $0x20] sm:$0xf]
    %v163 = vld [vmem:[#allocation2 + $0x24] sm:$0xf]
    %v164 = vld [vmem:[#allocation2 + $0x28] sm:$0xf]
    %v165 = vld [vmem:[#allocation2 + $0x2c] sm:$0xf]
    %v166 = vld [vmem:[#allocation2 + $0x30] sm:$0xf]
    %v167 = vld [vmem:[#allocation2 + $0x34] sm:$0xf]
    %v168 = vld [vmem:[#allocation2 + $0x38] sm:$0xf]
    %v169 = vld [vmem:[#allocation2 + $0x3c] sm:$0xf]
    %v170 = vld [vmem:[#allocation2 + $0x40] sm:$0xf]
    %v171 = vld [vmem:[#allocation2 + $0x44] sm:$0xf]
    %v172 = vld [vmem:[#allocation2 + $0x48] sm:$0xf]
    %v173 = vld [vmem:[#allocation2 + $0x4c] sm:$0xf]
    %v174 = vld [vmem:[#allocation2 + $0x50] sm:$0xf]
    %v175 = vld [vmem:[#allocation2 + $0x54] sm:$0xf]
    %v176 = vld [vmem:[#allocation2 + $0x58] sm:$0xf]
    %v177 = vld [vmem:[#allocation2 + $0x5c] sm:$0xf]
    %v178 = vld [vmem:[#allocation2 + $0x60] sm:$0xf]
    %v179 = vld [vmem:[#allocation2 + $0x64] sm:$0xf]
    %v180 = vld [vmem:[#allocation2 + $0x68] sm:$0xf]
    %v181 = vld [vmem:[#allocation2 + $0x6c] sm:$0xf]
    %v182 = vld [vmem:[#allocation2 + $0x70] sm:$0xf]
    %v183 = vld [vmem:[#allocation2 + $0x74] sm:$0xf]
    %v184 = vld [vmem:[#allocation2 + $0x78] sm:$0xf]
    %v185 = vld [vmem:[#allocation2 + $0x7c] sm:$0xf]
    %v186 = vld [vmem:[%s4] sm:$0x1]
    %v188 = vlaneseq
    %v189 = vshrl.u32 %v188, 7
    %v190 = vsub.s32 0, %v189
    %v191 = vrot.slane %v186, %v190
    %v225 = vunpack.c.l.b16 %v154
    %v226 = vunpack.c.l.b16 %v155
    %v227 = vunpack.c.l.b16 %v156
    %v228 = vunpack.c.l.b16 %v157
    %v229 = vunpack.c.l.b16 %v158
    %v230 = vunpack.c.l.b16 %v159
    %v231 = vunpack.c.l.b16 %v160
    %v232 = vunpack.c.l.b16 %v161
    %v233 = vunpack.c.l.b16 %v162
    %v234 = vunpack.c.l.b16 %v163
    %v235 = vunpack.c.l.b16 %v164
    %v236 = vunpack.c.l.b16 %v165
    %v237 = vunpack.c.l.b16 %v166
    %v238 = vunpack.c.l.b16 %v167
    %v239 = vunpack.c.l.b16 %v168
    %v240 = vunpack.c.l.b16 %v169
    %v241 = vunpack.c.l.b16 %v170
    %v242 = vunpack.c.l.b16 %v171
    %v243 = vunpack.c.l.b16 %v172
    %v244 = vunpack.c.l.b16 %v173
    %v245 = vunpack.c.l.b16 %v174
    %v246 = vunpack.c.l.b16 %v175
    %v247 = vunpack.c.l.b16 %v176
    %v248 = vunpack.c.l.b16 %v177
    %v249 = vunpack.c.l.b16 %v178
    %v250 = vunpack.c.l.b16 %v179
    %v251 = vunpack.c.l.b16 %v180
    %v252 = vunpack.c.l.b16 %v181
    %v253 = vunpack.c.l.b16 %v182
    %v254 = vunpack.c.l.b16 %v183
    %v255 = vunpack.c.l.b16 %v184
    %v256 = vunpack.c.l.b16 %v185
    %v257 = vpack.c.b16 %v226, %v225
    %v258 = vpack.c.b16 %v228, %v227
    %v259 = vpack.c.b16 %v230, %v229
    %v260 = vpack.c.b16 %v232, %v231
    %v261 = vpack.c.b16 %v234, %v233
    %v262 = vpack.c.b16 %v236, %v235
    %v263 = vpack.c.b16 %v238, %v237
    %v264 = vpack.c.b16 %v240, %v239
    %v265 = vpack.c.b16 %v242, %v241
    %v266 = vpack.c.b16 %v244, %v243
    %v267 = vpack.c.b16 %v246, %v245
    %v268 = vpack.c.b16 %v248, %v247
    %v269 = vpack.c.b16 %v250, %v249
    %v270 = vpack.c.b16 %v252, %v251
    %v271 = vpack.c.b16 %v254, %v253
    %v272 = vpack.c.b16 %v256, %v255
    %289 = vmatprep.subr.bf16.mxu0 0
    %290 = vmatpush1.bf16.msra.mxu0 %v264
    %291 = vmatprep.subr.bf16.mxu0 0
    %292 = vmatpush1.bf16.msra.mxu0 %v263
    %293 = vmatprep.subr.bf16.mxu0 0
    %294 = vmatpush1.bf16.msra.mxu0 %v262
    %295 = vmatprep.subr.bf16.mxu0 0
    %296 = vmatpush1.bf16.msra.mxu0 %v261
    %297 = vmatprep.subr.bf16.mxu0 0
    %298 = vmatpush1.bf16.msra.mxu0 %v260
    %299 = vmatprep.subr.bf16.mxu0 0
    %300 = vmatpush1.bf16.msra.mxu0 %v259
    %301 = vmatprep.subr.bf16.mxu0 0
    %302 = vmatpush1.bf16.msra.mxu0 %v258
    %303 = vmatprep.subr.bf16.mxu0 0
    %304 = vmatpush1.bf16.msra.mxu0 %v257
    %305 = vmatprep.subr.bf16.mxu0 0
    %306 = vmatpush2.bf16.msra.mxu0 %v272
    %307 = vmatprep.subr.bf16.mxu0 0
    %308 = vmatpush2.bf16.msra.mxu0 %v271
    %309 = vmatprep.subr.bf16.mxu0 0
    %310 = vmatpush2.bf16.msra.mxu0 %v270
    %311 = vmatprep.subr.bf16.mxu0 0
    %312 = vmatpush2.bf16.msra.mxu0 %v269
    %313 = vmatprep.subr.bf16.mxu0 0
    %314 = vmatpush2.bf16.msra.mxu0 %v268
    %315 = vmatprep.subr.bf16.mxu0 0
    %316 = vmatpush2.bf16.msra.mxu0 %v267
    %317 = vmatprep.subr.bf16.mxu0 0
    %318 = vmatpush2.bf16.msra.mxu0 %v266
    %319 = vmatprep.subr.bf16.mxu0 0
    %320 = vmatpush2.bf16.msra.mxu0 %v265
    %321 = vmatprep.mubr.bf16.mxu0 %v153
    %322 = vmatmul.mubr.bf16.gmra.mxu0 %v152
    %v323 = vpop.f32.mrf.mxu0
    %v324 = vadd.f32 %v191, %v323
    %v325 = vpop.f32.mrf.mxu0
    %v326 = vpop.f32.mrf.mxu0
    %v327 = vadd.f32 %v191, %v326
    %v328 = vpop.f32.mrf.mxu0
    %329 = vdwg.mxu0
    %v330 = vmax.f32 %v324, 0.0
    %v331 = vmax.f32 %v327, 0.0
    %v332 = vpack.c.bf16 %v331, %v330
    %v333 = vld [vmem:[%s5] sm:$0xf]
    %v334 = vld [vmem:[%s5 + $0x4] sm:$0xf]
    %v335 = vld [vmem:[%s5 + $0x8] sm:$0xf]
    %v336 = vld [vmem:[%s5 + $0xc] sm:$0xf]
    %v337 = vld [vmem:[%s5 + $0x10] sm:$0xf]
    %v338 = vld [vmem:[%s5 + $0x14] sm:$0xf]
    %v339 = vld [vmem:[%s5 + $0x18] sm:$0xf]
    %v340 = vld [vmem:[%s5 + $0x1c] sm:$0xf]
    %v341 = vld [vmem:[%s5 + $0x20] sm:$0xf]
    %v342 = vld [vmem:[%s5 + $0x24] sm:$0xf]
    %v343 = vld [vmem:[%s5 + $0x28] sm:$0xf]
    %v344 = vld [vmem:[%s5 + $0x2c] sm:$0xf]
    %v345 = vld [vmem:[%s5 + $0x30] sm:$0xf]
    %v346 = vld [vmem:[%s5 + $0x34] sm:$0xf]
    %v347 = vld [vmem:[%s5 + $0x38] sm:$0xf]
    %v348 = vld [vmem:[%s5 + $0x3c] sm:$0xf]
    %v349 = vld [vmem:[%s6] sm:$0x1]
    %v351 = vlaneseq
    %v352 = vshrl.u32 %v351, 7
    %v353 = vsub.s32 0, %v352
    %v354 = vrot.slane %v349, %v353
    %v372 = vunpack.c.l.b16 %v333
    %v373 = vunpack.c.l.b16 %v334
    %v374 = vunpack.c.l.b16 %v335
    %v375 = vunpack.c.l.b16 %v336
    %v376 = vunpack.c.l.b16 %v337
    %v377 = vunpack.c.l.b16 %v338
    %v378 = vunpack.c.l.b16 %v339
    %v379 = vunpack.c.l.b16 %v340
    %v380 = vunpack.c.l.b16 %v341
    %v381 = vunpack.c.l.b16 %v342
    %v382 = vunpack.c.l.b16 %v343
    %v383 = vunpack.c.l.b16 %v344
    %v384 = vunpack.c.l.b16 %v345
    %v385 = vunpack.c.l.b16 %v346
    %v386 = vunpack.c.l.b16 %v347
    %v387 = vunpack.c.l.b16 %v348
    %v388 = vpack.c.b16 %v373, %v372
    %v389 = vpack.c.b16 %v375, %v374
    %v390 = vpack.c.b16 %v377, %v376
    %v391 = vpack.c.b16 %v379, %v378
    %v392 = vpack.c.b16 %v381, %v380
    %v393 = vpack.c.b16 %v383, %v382
    %v394 = vpack.c.b16 %v385, %v384
    %v395 = vpack.c.b16 %v387, %v386
    %404 = vmatprep.subr.bf16.mxu0 0
    %405 = vmatpush1.bf16.msra.mxu0 %v395
    %406 = vmatprep.subr.bf16.mxu0 0
    %407 = vmatpush1.bf16.msra.mxu0 %v394
    %408 = vmatprep.subr.bf16.mxu0 0
    %409 = vmatpush1.bf16.msra.mxu0 %v393
    %410 = vmatprep.subr.bf16.mxu0 0
    %411 = vmatpush1.bf16.msra.mxu0 %v392
    %412 = vmatprep.subr.bf16.mxu0 0
    %413 = vmatpush1.bf16.msra.mxu0 %v391
    %414 = vmatprep.subr.bf16.mxu0 0
    %415 = vmatpush1.bf16.msra.mxu0 %v390
    %416 = vmatprep.subr.bf16.mxu0 0
    %417 = vmatpush1.bf16.msra.mxu0 %v389
    %418 = vmatprep.subr.bf16.mxu0 0
    %419 = vmatpush1.bf16.msra.mxu0 %v388
    %420 = vmatprep.subr.bf16.mxu0 0
    %421 = vmatpush2.bf16.msra.mxu0 0
    %422 = vmatprep.subr.bf16.mxu0 0
    %423 = vmatpush2.bf16.msra.mxu0 0
    %424 = vmatprep.subr.bf16.mxu0 0
    %425 = vmatpush2.bf16.msra.mxu0 0
    %426 = vmatprep.subr.bf16.mxu0 0
    %427 = vmatpush2.bf16.msra.mxu0 0
    %428 = vmatprep.subr.bf16.mxu0 0
    %429 = vmatpush2.bf16.msra.mxu0 0
    %430 = vmatprep.subr.bf16.mxu0 0
    %431 = vmatpush2.bf16.msra.mxu0 0
    %432 = vmatprep.subr.bf16.mxu0 0
    %433 = vmatpush2.bf16.msra.mxu0 0
    %434 = vmatprep.subr.bf16.mxu0 0
    %435 = vmatpush2.bf16.msra.mxu0 0
    %436 = vmatprep.mubr.bf16.mxu0 0
    %437 = vmatmul.mubr.bf16.gmra.mxu0 %v332
    %v438 = vpop.f32.mrf.mxu0
    %v439 = vadd.f32 %v354, %v438
    %v440 = vpop.f32.mrf.mxu0
    %v441 = vpop.f32.mrf.mxu0
    %v442 = vadd.f32 %v354, %v441
    %v443 = vpop.f32.mrf.mxu0
    %444 = vdwg.mxu0
    %vm445 = vcmask 523264
    %446 = vst.msk [vmem:[#allocation5] sm:$0xff] %vm445, %v439
    %447 = vst.msk [vmem:[#allocation5 + $0x8] sm:$0xff] %vm445, %v442
    // Predicated region
    $region34: #{tpu_custom_call.1} parent=1 // pred_check
      _
    $region35: #{tpu_custom_call.1} parent=1 // pred_check_branch
      %449 = sbr.rel (0) target = $region37
    $region36: #{tpu_custom_call.1} parent=1 // pred_region
      %s451 = ssub.s32 256, 256
      %452 = vsyncadd [#allocation4], %s451
      %s453 = sshll.u32 [#allocation5], 4
      %s454 = int_to_ptr.vmem [resolvable:$true] %s453
      %459 = dma.vmem_to_hbm [thread:$0]  %s454, 256, %s7, [#allocation4], 128, 128, 8
    $region37: #{tpu_custom_call.1} parent=1 // pred_fallthru
      _
    // Predicated region
    $region38: #{tpu_custom_call.1} parent=1 // pred_check
      _
    $region39: #{tpu_custom_call.1} parent=1 // pred_check_branch
      %461 = sbr.rel (0) target = $region41
    $region40: #{tpu_custom_call.1} parent=1 // pred_region
      %462 = dma.done [#allocation4], 256
    $region41: #{tpu_custom_call.1} parent=1 // pred_fallthru
      _
    %463 = vsyncpa [#allocation3], 1
    %464 = vsyncpa [#allocation4], 1

</llo_original>
